<compile_context>
chip_gen: v5e
topology: v5e:2x2
jax: 0.10.0
libtpu: 0.0.40
codegen_flags: <defaults>
</compile_context>

<pallas_src>
import functools

import numpy as np
import jax
import jax.numpy as jnp
from jax import lax
from jax.experimental import pallas as pl
from jax.experimental.pallas import tpu as pltpu


_FILTER_TAPS = {
    1: [1.0],
    2: [1.0, 1.0],
    3: [1.0, 2.0, 1.0],
    4: [1.0, 3.0, 3.0, 1.0],
    5: [1.0, 4.0, 6.0, 4.0, 1.0],
    6: [1.0, 5.0, 10.0, 10.0, 5.0, 1.0],
    7: [1.0, 6.0, 15.0, 20.0, 15.0, 6.0, 1.0],
}


def _filter_1d(filt_size):
    a = np.asarray(_FILTER_TAPS[filt_size], dtype=np.float64)
    return a / a.sum()   # outer(a,a)/sum(outer(a,a)) == outer(a/Σa, a/Σa)


def _src_index(i, n, pad_type):
    """Map a padded-coordinate index to a source index (None => zero pad)."""
    if 0 <= i < n:
        return i
    if pad_type in ("refl", "reflect"):
        return -i if i < 0 else 2 * n - 2 - i
    if pad_type in ("repl", "replicate"):
        return 0 if i < 0 else n - 1
    if pad_type == "zero":
        return None
    raise ValueError(f"pad type [{pad_type}] not recognized")


def _decimation_matrix(n, filt1d, stride, pad_before, pad_after, pad_type):
    """(n_out, n) matrix folding pad + 1-D blur + stride-`stride` decimation."""
    k = len(filt1d)
    n_pad = n + pad_before + pad_after
    n_out = (n_pad - k) // stride + 1
    d = np.zeros((n_out, n), dtype=np.float64)
    for o in range(n_out):
        for t in range(k):
            s = _src_index(o * stride + t - pad_before, n, pad_type)
            if s is not None:
                d[o, s] += filt1d[t]
    return d.astype(np.float32)


def _downsample_kernel_fused(a_ref, bt_ref, x_ref, o_ref, y_ref, *, tc, h):
    """x_ref: (1, tc*H, W) — whole channel tile flattened on the sublane axis."""
    # (1) lane contraction for ALL channels of the tile in one MXU matmul:
    #     (tc*H, W) @ (W, Wo) -> (tc*H, Wo), written to VMEM scratch.
    y_ref[...] = jnp.dot(
        x_ref[0].astype(jnp.float32), bt_ref[...],
        precision=lax.Precision.HIGHEST, preferred_element_type=jnp.float32)

    a = a_ref[...]                                      # (Ho, H)

    # (2) sublane contraction per channel: (Ho, H) @ (H, Wo) -> (Ho, Wo).
    @pl.loop(0, tc)
    def _(c):
        start = pl.multiple_of(c * h, h)                # aligned (H % 8 == 0)
        yc = y_ref[pl.ds(start, h), :]                  # (H, Wo)
        o_ref[0, c] = jnp.dot(
            a, yc, precision=lax.Precision.HIGHEST,
            preferred_element_type=jnp.float32).astype(o_ref.dtype)


def _downsample_kernel_loop(a_ref, bt_ref, x_ref, o_ref, *, tc):
    """Fallback (H % 8 != 0): per-channel 2-D matmuls, x_ref: (1, tc, H, W)."""
    a = a_ref[...]      # (Ho, H)
    bt = bt_ref[...]    # (W, Wo)

    @pl.loop(0, tc)
    def _(c):
        xc = x_ref[0, c].astype(jnp.float32)                       # (H, W)
        y = jnp.dot(xc, bt, precision=lax.Precision.HIGHEST,
                    preferred_element_type=jnp.float32)            # (H, Wo)
        oc = jnp.dot(a, y, precision=lax.Precision.HIGHEST,
                     preferred_element_type=jnp.float32)           # (Ho, Wo)
        o_ref[0, c] = oc.astype(o_ref.dtype)


def downsample(x, *, filt_size=3, stride=2, pad_type="reflect", pad_off=0,
               block_channels=None, _force_unfused=False):
    """x: (B, C, H, W). Returns the Downsample forward, shape (B, C, Ho, Wo)."""
    B, C, H, W = x.shape
    pad_before = int(1.0 * (filt_size - 1) / 2) + pad_off
    pad_after = int(np.ceil(1.0 * (filt_size - 1) / 2)) + pad_off

    f1d = _filter_1d(filt_size)
    A = _decimation_matrix(H, f1d, stride, pad_before, pad_after, pad_type)   # (Ho, H)
    Bm = _decimation_matrix(W, f1d, stride, pad_before, pad_after, pad_type)  # (Wo, W)
    Ho, Wo = A.shape[0], Bm.shape[0]
    a = jnp.asarray(A)                                  # (Ho, H) f32
    bt = jnp.asarray(np.ascontiguousarray(Bm.T))        # (W, Wo) f32

    # Channel tile: keep the per-step input slab ~2 MiB so double-buffered
    # input + output tiles + scratch fit the default scoped VMEM on every
    # generation (incl. v5e's 16 MiB scoped / v7x's 64 MiB physical); must
    # divide C so the grid tiles exactly.
    if block_channels is None:
        budget = 2 * 1024 * 1024
        per_ch = H * W * x.dtype.itemsize
        tc = max(1, min(C, budget // max(per_ch, 1)))
        while C % tc:
            tc -= 1
    else:
        tc = block_channels
    grid = (B, C // tc)

    # Fused path needs the flattened (tc*H, W) block to be sublane-tileable.
    fused = (not _force_unfused) and (H % 8 == 0)

    flops = 2 * B * C * (H * W * Wo + H * Wo * Ho)
    bytes_accessed = (B * C * H * W + B * C * Ho * Wo) * x.dtype.itemsize \
        + (Ho * H + W * Wo) * 4
    cost = pl.CostEstimate(flops=int(flops), transcendentals=0,
                           bytes_accessed=int(bytes_accessed))
    cparams = pltpu.CompilerParams(dimension_semantics=("parallel", "parallel"))
    out_shape = jax.ShapeDtypeStruct((B, C, Ho, Wo), x.dtype)
    const_specs = [
        pl.BlockSpec((Ho, H), lambda b, c: (0, 0)),     # A  (tiny, resident)
        pl.BlockSpec((W, Wo), lambda b, c: (0, 0)),     # B^T (tiny, resident)
    ]
    out_spec = pl.BlockSpec((1, tc, Ho, Wo), lambda b, c: (b, c, 0, 0))

    if fused:
        kernel = functools.partial(_downsample_kernel_fused, tc=tc, h=H)
        return pl.pallas_call(
            kernel,
            out_shape=out_shape,
            grid_spec=pltpu.PrefetchScalarGridSpec(
                num_scalar_prefetch=0,
                grid=grid,
                in_specs=const_specs + [
                    # x viewed as (B, C*H, W): one block = tc channels flattened.
                    pl.BlockSpec((1, tc * H, W), lambda b, c: (b, c, 0)),
                ],
                out_specs=out_spec,
                scratch_shapes=[pltpu.VMEM((tc * H, Wo), jnp.float32)],
            ),
            compiler_params=cparams,
            cost_estimate=cost,
        )(a, bt, x.reshape(B, C * H, W))

    kernel = functools.partial(_downsample_kernel_loop, tc=tc)
    return pl.pallas_call(
        kernel,
        out_shape=out_shape,
        grid_spec=pltpu.PrefetchScalarGridSpec(
            num_scalar_prefetch=0,
            grid=grid,
            in_specs=const_specs + [
                pl.BlockSpec((1, tc, H, W), lambda b, c: (b, c, 0, 0)),
            ],
            out_specs=out_spec,
        ),
        compiler_params=cparams,
        cost_estimate=cost,
    )(a, bt, x)


def _reference(x, *, filt_size=3, stride=2, pad_off=0):
    """Pure-JAX mirror of the PyTorch forward (reflect pad + depthwise conv)."""
    a = np.asarray(_FILTER_TAPS[filt_size], dtype=np.float64)
    filt = np.outer(a, a)
    filt = filt / filt.sum()
    pad_before = int(1.0 * (filt_size - 1) / 2) + pad_off
    pad_after = int(np.ceil(1.0 * (filt_size - 1) / 2)) + pad_off
    xp = jnp.pad(x, ((0, 0), (0, 0), (pad_before, pad_after),
                     (pad_before, pad_after)), mode="reflect")
    c = x.shape[1]
    w = jnp.broadcast_to(jnp.asarray(filt, x.dtype)[None, None],
                         (c, 1, filt_size, filt_size))
    return lax.conv_general_dilated(
        xp, w, window_strides=(stride, stride), padding="VALID",
        feature_group_count=c, dimension_numbers=("NCHW", "OIHW", "NCHW"),
        precision=lax.Precision.HIGHEST)


if __name__ == "__main__":
    B, C, H, W = 2, 4, 16, 16
    key = jax.random.PRNGKey(0)
    x = jax.random.normal(key, (B, C, H, W), dtype=jnp.float32)

    ref = _reference(x)

    # Fused (batched lane-contraction) path — the default for H % 8 == 0.
    out = jax.block_until_ready(downsample(x))
    assert out.shape == (B, C, H // 2, W // 2), out.shape
    assert out.dtype == x.dtype
    assert jnp.allclose(out, ref, atol=1e-4, rtol=1e-4), \
        float(jnp.max(jnp.abs(out - ref)))

    # Per-channel fallback path (used when H % 8 != 0) — exercised explicitly.
    out2 = jax.block_until_ready(downsample(x, _force_unfused=True))
    assert jnp.allclose(out2, ref, atol=1e-4, rtol=1e-4), \
        float(jnp.max(jnp.abs(out2 - ref)))

    print("KERNEL_OK")
</pallas_src>

<mosaic_0001>
module attributes {stable_mosaic.version = 11 : i64} {
  func.func @_downsample_kernel_fused(%arg0: i32, %arg1: i32, %arg2: memref<8x16xf32, #tpu.memory_space<vmem>>, %arg3: memref<16x8xf32, #tpu.memory_space<vmem>>, %arg4: memref<1x64x16xf32, #tpu.memory_space<vmem>>, %arg5: memref<1x4x8x8xf32, #tpu.memory_space<vmem>>, %arg6: memref<64x8xf32, #tpu.memory_space<vmem>>) attributes {dimension_semantics = [#tpu.dimension_semantics<parallel>, #tpu.dimension_semantics<parallel>], iteration_bounds = array<i64: 2, 1>, scalar_prefetch = 0 : i64, scratch_operands = 1 : i64, tpu.core_type = #tpu.core_type<tc>, window_params = [{pipeline_mode = #tpu.pipeline_mode<synchronous>, transform_indices = @transform_0, window_bounds = array<i64: 8, 16>}, {pipeline_mode = #tpu.pipeline_mode<synchronous>, transform_indices = @transform_1, window_bounds = array<i64: 16, 8>}, {transform_indices = @transform_2, window_bounds = array<i64: 1, 64, 16>}, {transform_indices = @transform_3, window_bounds = array<i64: 1, 4, 8, 8>}]} {
    %c0 = arith.constant 0 : index
    %c0_0 = arith.constant 0 : index
    %c0_1 = arith.constant 0 : index
    %0 = vector.load %arg4[%c0, %c0_0, %c0_1] : memref<1x64x16xf32, #tpu.memory_space<vmem>>, vector<1x64x16xf32>
    %1 = vector.shape_cast %0 : vector<1x64x16xf32> to vector<64x16xf32>
    %c0_2 = arith.constant 0 : index
    %c0_3 = arith.constant 0 : index
    %2 = vector.load %arg3[%c0_2, %c0_3] : memref<16x8xf32, #tpu.memory_space<vmem>>, vector<16x8xf32>
    %cst = arith.constant dense<0.000000e+00> : vector<64x8xf32>
    %3 = tpu.matmul %1, %2, %cst {dimension_numbers = #tpu.dot_dimension_numbers<[1], [0], [0], [1], [0, 0, 1, 1], [], []>, precision = #tpu.contract_precision<fp32>} : vector<64x16xf32>, vector<16x8xf32>, vector<64x8xf32> -> vector<64x8xf32>
    %c0_4 = arith.constant 0 : index
    %c0_5 = arith.constant 0 : index
    %4 = vector.load %arg6[%c0_4, %c0_5] : memref<64x8xf32, #tpu.memory_space<vmem>>, vector<64x8xf32>
    tpu.vector_store %arg6[%c0_4, %c0_5], %3 {strides = array<i32>} : memref<64x8xf32, #tpu.memory_space<vmem>>, vector<64x8xf32>,
    %c0_6 = arith.constant 0 : index
    %c0_7 = arith.constant 0 : index
    %5 = vector.load %arg2[%c0_6, %c0_7] : memref<8x16xf32, #tpu.memory_space<vmem>>, vector<8x16xf32>
    %c0_i32 = arith.constant 0 : i32
    %c4_i32 = arith.constant 4 : i32
    %6 = arith.addi %c0_i32, %c4_i32 : i32
    %c1_i32 = arith.constant 1 : i32
    scf.for %arg7 = %c0_i32 to %6 step %c1_i32  : i32 {
      %c1_i32_9 = arith.constant 1 : i32
      %7 = arith.muli %arg7, %c1_i32_9 : i32
      %c0_i32_10 = arith.constant 0 : i32
      %8 = arith.addi %c0_i32_10, %7 : i32
      %c16_i32 = arith.constant 16 : i32
      %9 = arith.muli %8, %c16_i32 : i32
      %10 = tpu.assume_multiple %9, 16 : i32
      %11 = arith.index_cast %10 : i32 to index
      %c0_11 = arith.constant 0 : index
      %12 = vector.load %arg6[%11, %c0_11] : memref<64x8xf32, #tpu.memory_space<vmem>>, vector<16x8xf32>
      %cst_12 = arith.constant dense<0.000000e+00> : vector<8x8xf32>
      %13 = tpu.matmul %5, %12, %cst_12 {dimension_numbers = #tpu.dot_dimension_numbers<[1], [0], [0], [1], [0, 0, 1, 1], [], []>, precision = #tpu.contract_precision<fp32>} : vector<8x16xf32>, vector<16x8xf32>, vector<8x8xf32> -> vector<8x8xf32>
      %c0_13 = arith.constant 0 : index
      %14 = arith.index_cast %8 : i32 to index
      %c0_14 = arith.constant 0 : index
      %c0_15 = arith.constant 0 : index
      %15 = vector.load %arg5[%c0_13, %14, %c0_14, %c0_15] : memref<1x4x8x8xf32, #tpu.memory_space<vmem>>, vector<1x1x8x8xf32>
      %16 = vector.shape_cast %15 : vector<1x1x8x8xf32> to vector<8x8xf32>
      %17 = vector.shape_cast %13 : vector<8x8xf32> to vector<1x1x8x8xf32>
      tpu.vector_store %arg5[%c0_13, %14, %c0_14, %c0_15], %17 {strides = array<i32>} : memref<1x4x8x8xf32, #tpu.memory_space<vmem>>, vector<1x1x8x8xf32>,
    }
    %c4_i32_8 = arith.constant 4 : i32
    return
  }
  func.func @transform_0(%arg0: i32, %arg1: i32) -> (i32, i32) {
    %c0_i32 = arith.constant 0 : i32
    %c0_i32_0 = arith.constant 0 : i32
    %c0_i32_1 = arith.constant 0 : i32
    return %c0_i32, %c0_i32_0 : i32, i32
  }
  func.func @transform_1(%arg0: i32, %arg1: i32) -> (i32, i32) {
    %c0_i32 = arith.constant 0 : i32
    %c0_i32_0 = arith.constant 0 : i32
    %c0_i32_1 = arith.constant 0 : i32
    return %c0_i32, %c0_i32_0 : i32, i32
  }
  func.func @transform_2(%arg0: i32, %arg1: i32) -> (i32, i32, i32) {
    %c0_i32 = arith.constant 0 : i32
    %c0_i32_0 = arith.constant 0 : i32
    return %arg0, %arg1, %c0_i32 : i32, i32, i32
  }
  func.func @transform_3(%arg0: i32, %arg1: i32) -> (i32, i32, i32, i32) {
    %c0_i32 = arith.constant 0 : i32
    %c0_i32_0 = arith.constant 0 : i32
    %c0_i32_1 = arith.constant 0 : i32
    return %arg0, %arg1, %c0_i32, %c0_i32_0 : i32, i32, i32, i32
  }
}

</mosaic_0001>

<llo_original>
// kernel: tpu_custom_call.1
$region0: #{tpu_custom_call.1}
  #allocation0 [shape = 'u32[]', space=smem, size = 0x4, offset = 0x4, fixed_abs, tag = 'smem constant byte address 0x4 - core index']
  #allocation1 [shape = 'u32[72,128]{1,0:T(1,128)}', space=vmem, size = 0x9000, scoped, tag = 'internal scratch']
  #allocation2 [shape = 'f32[64,8]{1,0:T(8,128)}', space=vmem, size = 0x8000, scoped, tag = 'scratch operand']
  %s0 = inlined_call_operand.vmem [shape: f32[8,16], index: 0, kind: input, shape index: {}]
  %s1 = inlined_call_operand.vmem [shape: f32[16,8], index: 1, kind: input, shape index: {}]
  %s2 = inlined_call_operand.vmem [shape: f32[2,64,16], index: 2, kind: input, shape index: {}]
  %s3 = inlined_call_operand.hbm [shape: f32[2,4,8,8], index: 3, kind: output, shape index: {}]
  %s4 = sld [smem:[#allocation0]]
  $region52: #{tpu_custom_call.1} parent=0
    _
  %s6 = ssub.s32 1, %s4
  %s7 = scalar_select 0, %s6, %s4
  $region1: #{tpu_custom_call.1} parent=0
    #allocation3 [shape = 'u8[32768]{0}', space=vmem, size = 0x8000, scoped, tag = 'output window, operand 0']
    #allocation4 [shape = 's32[2]{0}', space=sflag, size = 0x8, scoped, tag = 'scoped memory for tpu_custom_call.1']
    %8 = vsyncpa [#allocation4], 0
    %s9 = scalar_lea.sflag [#allocation4], 1
    %10 = vsyncpa %s9, 0
    loop: start=0, step=1, limit=4
    $region2: #{tpu_custom_call.1} parent=1 // loop_pre_header
      _
    $region3: #{tpu_custom_call.1} parent=1 // loop_header
      %s12 = sphi 0, %s16
      %p13 = scmp.ge.s32.totalorder %s12, 4
      %s19 = sphi 0, %s31
      %s20 = sphi 0, %s27
      %s21 = sphi 0, %s19
      %s22 = sphi 0, %s20
      %s23 = sphi 0, %s21
      %s24 = sphi 0, %s22
      %s32 = sphi 0, %s32
      %s34 = sphi 0, %s32
      %s35 = sphi 0, %s34
      %s49 = sphi 0, %s35
      %s53 = sphi 0, %s53
      %s55 = sphi 0, %s53
      %s56 = sphi 0, %s55
      %s70 = sphi 0, %s56
      %s78 = sphi 0, %s80
      %s81 = sphi 0, %s78
      %s82 = sphi 0, %s81
      %s98 = sphi 0, %s82
      %s106 = sphi 0, %s108
      %s109 = sphi 0, %s106
      %s110 = sphi 0, %s109
      %s126 = sphi 0, %s110
    $region4: #{tpu_custom_call.1} parent=1 // loop_header_branch
      %15 = sbr.rel (%p13) target = $region8
    $region5: #{tpu_custom_call.1} parent=1 // loop_body
      %s17 = ssub.s32 %s12, 1
      %s18 = ssub.s32 %s12, 2
      %s25 = sadd.s32 1, %s20
      %p26 = scmp.ge.s32.totalorder %s25, 1
      %s27 = scalar_select %p26, 0, %s25
      %s28 = sadd.s32 1, %s19
      %s29 = scalar_select %p26, %s28, %s19
      %p30 = scmp.ge.s32.totalorder %s29, 2
      %s31 = scalar_select %p30, 0, %s29
      %s33 = sadd.s32 %s32, 1
      %p36 = scmp.eq.s32.totalorder %s12, 1
      %p37 = scmp.ne.s32.totalorder %s32, %s34
      %p38 = scmp.eq.s32.totalorder %s12, 0
      %p39 = por %p37, %p38
      %p40 = scmp.ne.s32.totalorder %s32, %s34
      %p41 = scmp.eq.s32.totalorder %s17, 1
      %p42 = por %p40, %p41
      %p43 = scmp.ne.s32.totalorder %s34, %s35
      %p44 = scmp.eq.s32.totalorder %s17, 0
      %p45 = por %p43, %p44
      %p46 = scmp.ne.s32.totalorder %s34, %s35
      %p47 = scmp.eq.s32.totalorder %s18, 1
      %p48 = por %p46, %p47
      %p50 = scmp.ne.s32.totalorder %s35, %s49
      %p51 = scmp.eq.s32.totalorder %s18, 0
      %p52 = por %p50, %p51
      %s54 = sadd.s32 %s53, 1
      %p57 = scmp.eq.s32.totalorder %s12, 1
      %p58 = scmp.ne.s32.totalorder %s53, %s55
      %p59 = scmp.eq.s32.totalorder %s12, 0
      %p60 = por %p58, %p59
      %p61 = scmp.ne.s32.totalorder %s53, %s55
      %p62 = scmp.eq.s32.totalorder %s17, 1
      %p63 = por %p61, %p62
      %p64 = scmp.ne.s32.totalorder %s55, %s56
      %p65 = scmp.eq.s32.totalorder %s17, 0
      %p66 = por %p64, %p65
      %p67 = scmp.ne.s32.totalorder %s55, %s56
      %p68 = scmp.eq.s32.totalorder %s18, 1
      %p69 = por %p67, %p68
      %p71 = scmp.ne.s32.totalorder %s56, %s70
      %p72 = scmp.eq.s32.totalorder %s18, 0
      %p73 = por %p71, %p72
      %s74 = ssub.s32 %s19, %s31
      %s75 = ssub.s32 %s20, %s27
      %s76 = sor.u32 %s74, %s75
      %p77 = scmp.eq.s32.totalorder %s76, 0
      %s79 = sadd.s32 %s78, 1
      %s80 = scalar_select %p77, %s78, %s79
      %p83 = pneg %p77
      %p84 = scmp.eq.s32.totalorder %s12, 1
      %p85 = por %p83, %p84
      %p86 = scmp.ne.s32.totalorder %s78, %s81
      %p87 = scmp.eq.s32.totalorder %s12, 0
      %p88 = por %p86, %p87
      %p89 = scmp.ne.s32.totalorder %s78, %s81
      %p90 = scmp.eq.s32.totalorder %s17, 1
      %p91 = por %p89, %p90
      %p92 = scmp.ne.s32.totalorder %s81, %s82
      %p93 = scmp.eq.s32.totalorder %s17, 0
      %p94 = por %p92, %p93
      %p95 = scmp.ne.s32.totalorder %s81, %s82
      %p96 = scmp.eq.s32.totalorder %s18, 1
      %p97 = por %p95, %p96
      %p99 = scmp.ne.s32.totalorder %s82, %s98
      %p100 = scmp.eq.s32.totalorder %s18, 0
      %p101 = por %p99, %p100
      %s102 = ssub.s32 %s19, %s31
      %s103 = ssub.s32 %s20, %s27
      %s104 = sor.u32 %s102, %s103
      %p105 = scmp.eq.s32.totalorder %s104, 0
      %s107 = sadd.s32 %s106, 1
      %s108 = scalar_select %p105, %s106, %s107
      %p111 = pneg %p105
      %p112 = scmp.eq.s32.totalorder %s12, 1
      %p113 = por %p111, %p112
      %p114 = scmp.ne.s32.totalorder %s106, %s109
      %p115 = scmp.eq.s32.totalorder %s12, 0
      %p116 = por %p114, %p115
      %p117 = scmp.ne.s32.totalorder %s106, %s109
      %p118 = scmp.eq.s32.totalorder %s17, 1
      %p119 = por %p117, %p118
      %p120 = scmp.ne.s32.totalorder %s109, %s110
      %p121 = scmp.eq.s32.totalorder %s17, 0
      %p122 = por %p120, %p121
      %p123 = scmp.ne.s32.totalorder %s109, %s110
      %p124 = scmp.eq.s32.totalorder %s18, 1
      %p125 = por %p123, %p124
      %p127 = scmp.ne.s32.totalorder %s110, %s126
      %p128 = scmp.eq.s32.totalorder %s18, 0
      %p129 = por %p127, %p128
      %p130 = scmp.le.s32.totalorder 1, %s12
      %p131 = scmp.lt.s32.totalorder %s12, 3
      %p132 = pnand %p130, %p131
      %p133 = pneg %p132
      // Predicated region
      $region9: #{tpu_custom_call.1} parent=5 // pred_check
        _
      $region10: #{tpu_custom_call.1} parent=5 // pred_check_branch
        %135 = sbr.rel (%p132) target = $region12
      $region11: #{tpu_custom_call.1} parent=5 // pred_region
        %s136 = ssub.s32 %s12, 1
        // Predicated region
        $region13: #{tpu_custom_call.1} parent=11 // pred_check
          %p137 = pneg %p45
        $region14: #{tpu_custom_call.1} parent=11 // pred_check_branch
          %139 = sbr.rel (%p137) target = $region16
        $region15: #{tpu_custom_call.1} parent=11 // pred_region
          _
        $region16: #{tpu_custom_call.1} parent=11 // pred_fallthru
          _
        // Predicated region
        $region17: #{tpu_custom_call.1} parent=11 // pred_check
          %p140 = pneg %p66
        $region18: #{tpu_custom_call.1} parent=11 // pred_check_branch
          %142 = sbr.rel (%p140) target = $region20
        $region19: #{tpu_custom_call.1} parent=11 // pred_region
          _
        $region20: #{tpu_custom_call.1} parent=11 // pred_fallthru
          _
      $region12: #{tpu_custom_call.1} parent=5 // pred_fallthru
        _
      %p143 = scmp.lt.s32.totalorder %s12, 2
      // Predicated region
      $region21: #{tpu_custom_call.1} parent=5 // pred_check
        %p144 = pneg %p143
      $region22: #{tpu_custom_call.1} parent=5 // pred_check_branch
        %146 = sbr.rel (%p144) target = $region24
      $region23: #{tpu_custom_call.1} parent=5 // pred_region
        // Predicated region
        $region25: #{tpu_custom_call.1} parent=23 // pred_check
          %p147 = pneg %p88
        $region26: #{tpu_custom_call.1} parent=23 // pred_check_branch
          %149 = sbr.rel (%p147) target = $region28
        $region27: #{tpu_custom_call.1} parent=23 // pred_region
          %s150 = smul.u32 8, %s20
          %p151 = scmp.lt.s32.totalorder %s19, 1
          %s152 = scalar_select %p151, %s19, 1
          %p153 = scmp.lt.s32.totalorder %s150, 7
          %s154 = scalar_select %p153, %s150, 7
          %s155 = smul.addr %s152, 8
          %s156 = sadd.s32 %s154, %s155
          %s157 = smul.addr %s156, 8
          %s158 = scalar_lea.vmem %s2, %s157
          %s159 = smul.u32 8, %s20
        $region28: #{tpu_custom_call.1} parent=23 // pred_fallthru
          _
      $region24: #{tpu_custom_call.1} parent=5 // pred_fallthru
        _
      %p160 = scmp.le.s32.totalorder 1, %s12
      %p161 = scmp.lt.s32.totalorder %s12, 3
      %p162 = pnand %p160, %p161
      %p163 = pneg %p162
      // Predicated region
      $region29: #{tpu_custom_call.1} parent=5 // pred_check
        _
      $region30: #{tpu_custom_call.1} parent=5 // pred_check_branch
        %165 = sbr.rel (%p162) target = $region32
      $region31: #{tpu_custom_call.1} parent=5 // pred_region
        %s166 = ssub.s32 %s12, 1
        %p167 = pneg %p45
        %p168 = pneg %p42
        %p169 = pneg %p66
        %p170 = pneg %p63
        %s171 = smul.u32 8, %s22
        %p172 = scmp.lt.s32.totalorder %s21, 1
        %s173 = scalar_select %p172, %s21, 1
        %p174 = scmp.lt.s32.totalorder %s171, 7
        %s175 = scalar_select %p174, %s171, 7
        %s176 = smul.addr %s173, 8
        %s177 = sadd.s32 %s175, %s176
        %s178 = smul.addr %s177, 8
        %s179 = scalar_lea.vmem %s2, %s178
        %p180 = pneg %p94
        %p181 = pneg %p91
        %p182 = pneg %p122
        %p183 = pneg %p119
        %s184 = sand.u32 %s109, 1
        %s185 = scalar_lea.sflag [#allocation4], %s184
        %s186 = sand.u32 %s109, 1
        %s187 = smul.addr %s186, 32
        %s188 = scalar_lea.vmem [#allocation3], %s187
        %s189 = smul.u32 8, %s22
        %p190 = scmp.lt.s32.totalorder %s21, 1
        %s191 = scalar_select %p190, %s21, 1
        %p192 = scmp.lt.s32.totalorder %s189, 7
        %s193 = scalar_select %p192, %s189, 7
        %s194 = smul.addr %s191, 8
        %s195 = sadd.s32 %s193, %s194
        %s196 = smul.addr %s195, 8
        %s197 = scalar_lea.vmem %s2, %s196
        %s198 = smul.u32 8, %s22
        %s199 = smul.u32 4, %s22
        %v200 = vld [vmem:[%s197] sm:$0xff]
        %v201 = vld [vmem:[%s197 + $0x8] sm:$0xff]
        %v202 = vld [vmem:[%s197 + $0x10] sm:$0xff]
        %v203 = vld [vmem:[%s197 + $0x18] sm:$0xff]
        %v204 = vld [vmem:[%s197 + $0x20] sm:$0xff]
        %v205 = vld [vmem:[%s197 + $0x28] sm:$0xff]
        %v206 = vld [vmem:[%s197 + $0x30] sm:$0xff]
        %v207 = vld [vmem:[%s197 + $0x38] sm:$0xff]
        %v208 = vld [vmem:[%s1] sm:$0xff]
        %v209 = vld [vmem:[%s1 + $0x8] sm:$0xff]
        %vm210 = vcmask 130048
        %v212 = vsel %vm210, %v200, 0
        %v215 = vsel %vm210, %v201, 0
        %v218 = vsel %vm210, %v202, 0
        %v221 = vsel %vm210, %v203, 0
        %v224 = vsel %vm210, %v204, 0
        %v227 = vsel %vm210, %v205, 0
        %v230 = vsel %vm210, %v206, 0
        %v233 = vsel %vm210, %v207, 0
        %235 = vmatpush.msra.mxu0 0.0
        %236 = vmatpush.msra.mxu0 0.0
        %237 = vmatpush.msra.mxu0 0.0
        %238 = vmatpush.msra.mxu0 0.0
        %239 = vmatpush.msra.mxu0 0.0
        %240 = vmatpush.msra.mxu0 0.0
        %241 = vmatpush.msra.mxu0 0.0
        %242 = vmatpush.msra.mxu0 0.0
        %243 = vmatpush.msra.mxu0 0.0
        %244 = vmatpush.msra.mxu0 0.0
        %245 = vmatpush.msra.mxu0 0.0
        %246 = vmatpush.msra.mxu0 0.0
        %247 = vmatpush.msra.mxu0 0.0
        %248 = vmatpush.msra.mxu0 0.0
        %v249 = vand.u32 %v209, 4294901760
        %250 = vmatpush.msra.mxu0 %v249
        %v251 = vand.u32 %v208, 4294901760
        %252 = vmatpush.msra.mxu0 %v251
        %v253 = vand.u32 %v212, 4294901760
        %v254 = vsub.f32 %v212, %v253
        %v255 = vand.u32 %v254, 4294901760
        %v256 = vsub.f32 %v254, %v255
        %v257 = vand.u32 %v256, 4294901760
        %258 = vmatmul.f32.gmra.mxu0 %v257
        %v259 = vpop.f32.mrf.mxu0
        %v260 = vadd.f32 0.0, %v259
        %v261 = vand.u32 %v215, 4294901760
        %v262 = vsub.f32 %v215, %v261
        %v263 = vand.u32 %v262, 4294901760
        %v264 = vsub.f32 %v262, %v263
        %v265 = vand.u32 %v264, 4294901760
        %266 = vmatmul.f32.gmra.mxu0 %v265
        %v267 = vpop.f32.mrf.mxu0
        %v268 = vadd.f32 0.0, %v267
        %v269 = vand.u32 %v218, 4294901760
        %v270 = vsub.f32 %v218, %v269
        %v271 = vand.u32 %v270, 4294901760
        %v272 = vsub.f32 %v270, %v271
        %v273 = vand.u32 %v272, 4294901760
        %274 = vmatmul.f32.gmra.mxu0 %v273
        %v275 = vpop.f32.mrf.mxu0
        %v276 = vadd.f32 0.0, %v275
        %v277 = vand.u32 %v221, 4294901760
        %v278 = vsub.f32 %v221, %v277
        %v279 = vand.u32 %v278, 4294901760
        %v280 = vsub.f32 %v278, %v279
        %v281 = vand.u32 %v280, 4294901760
        %282 = vmatmul.f32.gmra.mxu0 %v281
        %v283 = vpop.f32.mrf.mxu0
        %v284 = vadd.f32 0.0, %v283
        %v285 = vand.u32 %v224, 4294901760
        %v286 = vsub.f32 %v224, %v285
        %v287 = vand.u32 %v286, 4294901760
        %v288 = vsub.f32 %v286, %v287
        %v289 = vand.u32 %v288, 4294901760
        %290 = vmatmul.f32.gmra.mxu0 %v289
        %v291 = vpop.f32.mrf.mxu0
        %v292 = vadd.f32 0.0, %v291
        %v293 = vand.u32 %v227, 4294901760
        %v294 = vsub.f32 %v227, %v293
        %v295 = vand.u32 %v294, 4294901760
        %v296 = vsub.f32 %v294, %v295
        %v297 = vand.u32 %v296, 4294901760
        %298 = vmatmul.f32.gmra.mxu0 %v297
        %v299 = vpop.f32.mrf.mxu0
        %v300 = vadd.f32 0.0, %v299
        %v301 = vand.u32 %v230, 4294901760
        %v302 = vsub.f32 %v230, %v301
        %v303 = vand.u32 %v302, 4294901760
        %v304 = vsub.f32 %v302, %v303
        %v305 = vand.u32 %v304, 4294901760
        %306 = vmatmul.f32.gmra.mxu0 %v305
        %v307 = vpop.f32.mrf.mxu0
        %v308 = vadd.f32 0.0, %v307
        %v309 = vand.u32 %v233, 4294901760
        %v310 = vsub.f32 %v233, %v309
        %v311 = vand.u32 %v310, 4294901760
        %v312 = vsub.f32 %v310, %v311
        %v313 = vand.u32 %v312, 4294901760
        %314 = vmatmul.f32.gmra.mxu0 %v313
        %v315 = vpop.f32.mrf.mxu0
        %v316 = vadd.f32 0.0, %v315
        %317 = vdwg.mxu0
        %318 = vmatpush.msra.mxu0 0.0
        %319 = vmatpush.msra.mxu0 0.0
        %320 = vmatpush.msra.mxu0 0.0
        %321 = vmatpush.msra.mxu0 0.0
        %322 = vmatpush.msra.mxu0 0.0
        %323 = vmatpush.msra.mxu0 0.0
        %324 = vmatpush.msra.mxu0 0.0
        %325 = vmatpush.msra.mxu0 0.0
        %326 = vmatpush.msra.mxu0 0.0
        %327 = vmatpush.msra.mxu0 0.0
        %328 = vmatpush.msra.mxu0 0.0
        %329 = vmatpush.msra.mxu0 0.0
        %330 = vmatpush.msra.mxu0 0.0
        %331 = vmatpush.msra.mxu0 0.0
        %v332 = vand.u32 %v209, 4294901760
        %v333 = vsub.f32 %v209, %v332
        %v334 = vand.u32 %v333, 4294901760
        %v335 = vsub.f32 %v333, %v334
        %v336 = vand.u32 %v335, 4294901760
        %337 = vmatpush.msra.mxu0 %v336
        %v338 = vand.u32 %v208, 4294901760
        %v339 = vsub.f32 %v208, %v338
        %v340 = vand.u32 %v339, 4294901760
        %v341 = vsub.f32 %v339, %v340
        %v342 = vand.u32 %v341, 4294901760
        %343 = vmatpush.msra.mxu0 %v342
        %v344 = vand.u32 %v212, 4294901760
        %345 = vmatmul.f32.gmra.mxu0 %v344
        %v346 = vpop.f32.mrf.mxu0
        %v347 = vadd.f32 %v260, %v346
        %v348 = vand.u32 %v215, 4294901760
        %349 = vmatmul.f32.gmra.mxu0 %v348
        %v350 = vpop.f32.mrf.mxu0
        %v351 = vadd.f32 %v268, %v350
        %v352 = vand.u32 %v218, 4294901760
        %353 = vmatmul.f32.gmra.mxu0 %v352
        %v354 = vpop.f32.mrf.mxu0
        %v355 = vadd.f32 %v276, %v354
        %v356 = vand.u32 %v221, 4294901760
        %357 = vmatmul.f32.gmra.mxu0 %v356
        %v358 = vpop.f32.mrf.mxu0
        %v359 = vadd.f32 %v284, %v358
        %v360 = vand.u32 %v224, 4294901760
        %361 = vmatmul.f32.gmra.mxu0 %v360
        %v362 = vpop.f32.mrf.mxu0
        %v363 = vadd.f32 %v292, %v362
        %v364 = vand.u32 %v227, 4294901760
        %365 = vmatmul.f32.gmra.mxu0 %v364
        %v366 = vpop.f32.mrf.mxu0
        %v367 = vadd.f32 %v300, %v366
        %v368 = vand.u32 %v230, 4294901760
        %369 = vmatmul.f32.gmra.mxu0 %v368
        %v370 = vpop.f32.mrf.mxu0
        %v371 = vadd.f32 %v308, %v370
        %v372 = vand.u32 %v233, 4294901760
        %373 = vmatmul.f32.gmra.mxu0 %v372
        %v374 = vpop.f32.mrf.mxu0
        %v375 = vadd.f32 %v316, %v374
        %376 = vdwg.mxu0
        %377 = vmatpush.msra.mxu0 0.0
        %378 = vmatpush.msra.mxu0 0.0
        %379 = vmatpush.msra.mxu0 0.0
        %380 = vmatpush.msra.mxu0 0.0
        %381 = vmatpush.msra.mxu0 0.0
        %382 = vmatpush.msra.mxu0 0.0
        %383 = vmatpush.msra.mxu0 0.0
        %384 = vmatpush.msra.mxu0 0.0
        %385 = vmatpush.msra.mxu0 0.0
        %386 = vmatpush.msra.mxu0 0.0
        %387 = vmatpush.msra.mxu0 0.0
        %388 = vmatpush.msra.mxu0 0.0
        %389 = vmatpush.msra.mxu0 0.0
        %390 = vmatpush.msra.mxu0 0.0
        %v391 = vand.u32 %v209, 4294901760
        %v392 = vsub.f32 %v209, %v391
        %393 = vmatpush.msra.mxu0 %v392
        %v394 = vand.u32 %v208, 4294901760
        %v395 = vsub.f32 %v208, %v394
        %396 = vmatpush.msra.mxu0 %v395
        %v397 = vand.u32 %v212, 4294901760
        %v398 = vsub.f32 %v212, %v397
        %399 = vmatmul.f32.gmra.mxu0 %v398
        %v400 = vpop.f32.mrf.mxu0
        %v401 = vadd.f32 %v347, %v400
        %v402 = vand.u32 %v215, 4294901760
        %v403 = vsub.f32 %v215, %v402
        %404 = vmatmul.f32.gmra.mxu0 %v403
        %v405 = vpop.f32.mrf.mxu0
        %v406 = vadd.f32 %v351, %v405
        %v407 = vand.u32 %v218, 4294901760
        %v408 = vsub.f32 %v218, %v407
        %409 = vmatmul.f32.gmra.mxu0 %v408
        %v410 = vpop.f32.mrf.mxu0
        %v411 = vadd.f32 %v355, %v410
        %v412 = vand.u32 %v221, 4294901760
        %v413 = vsub.f32 %v221, %v412
        %414 = vmatmul.f32.gmra.mxu0 %v413
        %v415 = vpop.f32.mrf.mxu0
        %v416 = vadd.f32 %v359, %v415
        %v417 = vand.u32 %v224, 4294901760
        %v418 = vsub.f32 %v224, %v417
        %419 = vmatmul.f32.gmra.mxu0 %v418
        %v420 = vpop.f32.mrf.mxu0
        %v421 = vadd.f32 %v363, %v420
        %v422 = vand.u32 %v227, 4294901760
        %v423 = vsub.f32 %v227, %v422
        %424 = vmatmul.f32.gmra.mxu0 %v423
        %v425 = vpop.f32.mrf.mxu0
        %v426 = vadd.f32 %v367, %v425
        %v427 = vand.u32 %v230, 4294901760
        %v428 = vsub.f32 %v230, %v427
        %429 = vmatmul.f32.gmra.mxu0 %v428
        %v430 = vpop.f32.mrf.mxu0
        %v431 = vadd.f32 %v371, %v430
        %v432 = vand.u32 %v233, 4294901760
        %v433 = vsub.f32 %v233, %v432
        %434 = vmatmul.f32.gmra.mxu0 %v433
        %v435 = vpop.f32.mrf.mxu0
        %v436 = vadd.f32 %v375, %v435
        %437 = vdwg.mxu0
        %438 = vmatpush.msra.mxu0 0.0
        %439 = vmatpush.msra.mxu0 0.0
        %440 = vmatpush.msra.mxu0 0.0
        %441 = vmatpush.msra.mxu0 0.0
        %442 = vmatpush.msra.mxu0 0.0
        %443 = vmatpush.msra.mxu0 0.0
        %444 = vmatpush.msra.mxu0 0.0
        %445 = vmatpush.msra.mxu0 0.0
        %446 = vmatpush.msra.mxu0 0.0
        %447 = vmatpush.msra.mxu0 0.0
        %448 = vmatpush.msra.mxu0 0.0
        %449 = vmatpush.msra.mxu0 0.0
        %450 = vmatpush.msra.mxu0 0.0
        %451 = vmatpush.msra.mxu0 0.0
        %v452 = vand.u32 %v209, 4294901760
        %453 = vmatpush.msra.mxu0 %v452
        %v454 = vand.u32 %v208, 4294901760
        %455 = vmatpush.msra.mxu0 %v454
        %v456 = vand.u32 %v212, 4294901760
        %v457 = vsub.f32 %v212, %v456
        %v458 = vand.u32 %v457, 4294901760
        %459 = vmatmul.f32.gmra.mxu0 %v458
        %v460 = vpop.f32.mrf.mxu0
        %v461 = vadd.f32 %v401, %v460
        %v462 = vand.u32 %v215, 4294901760
        %v463 = vsub.f32 %v215, %v462
        %v464 = vand.u32 %v463, 4294901760
        %465 = vmatmul.f32.gmra.mxu0 %v464
        %v466 = vpop.f32.mrf.mxu0
        %v467 = vadd.f32 %v406, %v466
        %v468 = vand.u32 %v218, 4294901760
        %v469 = vsub.f32 %v218, %v468
        %v470 = vand.u32 %v469, 4294901760
        %471 = vmatmul.f32.gmra.mxu0 %v470
        %v472 = vpop.f32.mrf.mxu0
        %v473 = vadd.f32 %v411, %v472
        %v474 = vand.u32 %v221, 4294901760
        %v475 = vsub.f32 %v221, %v474
        %v476 = vand.u32 %v475, 4294901760
        %477 = vmatmul.f32.gmra.mxu0 %v476
        %v478 = vpop.f32.mrf.mxu0
        %v479 = vadd.f32 %v416, %v478
        %v480 = vand.u32 %v224, 4294901760
        %v481 = vsub.f32 %v224, %v480
        %v482 = vand.u32 %v481, 4294901760
        %483 = vmatmul.f32.gmra.mxu0 %v482
        %v484 = vpop.f32.mrf.mxu0
        %v485 = vadd.f32 %v421, %v484
        %v486 = vand.u32 %v227, 4294901760
        %v487 = vsub.f32 %v227, %v486
        %v488 = vand.u32 %v487, 4294901760
        %489 = vmatmul.f32.gmra.mxu0 %v488
        %v490 = vpop.f32.mrf.mxu0
        %v491 = vadd.f32 %v426, %v490
        %v492 = vand.u32 %v230, 4294901760
        %v493 = vsub.f32 %v230, %v492
        %v494 = vand.u32 %v493, 4294901760
        %495 = vmatmul.f32.gmra.mxu0 %v494
        %v496 = vpop.f32.mrf.mxu0
        %v497 = vadd.f32 %v431, %v496
        %v498 = vand.u32 %v233, 4294901760
        %v499 = vsub.f32 %v233, %v498
        %v500 = vand.u32 %v499, 4294901760
        %501 = vmatmul.f32.gmra.mxu0 %v500
        %v502 = vpop.f32.mrf.mxu0
        %v503 = vadd.f32 %v436, %v502
        %504 = vdwg.mxu0
        %505 = vmatpush.msra.mxu0 0.0
        %506 = vmatpush.msra.mxu0 0.0
        %507 = vmatpush.msra.mxu0 0.0
        %508 = vmatpush.msra.mxu0 0.0
        %509 = vmatpush.msra.mxu0 0.0
        %510 = vmatpush.msra.mxu0 0.0
        %511 = vmatpush.msra.mxu0 0.0
        %512 = vmatpush.msra.mxu0 0.0
        %513 = vmatpush.msra.mxu0 0.0
        %514 = vmatpush.msra.mxu0 0.0
        %515 = vmatpush.msra.mxu0 0.0
        %516 = vmatpush.msra.mxu0 0.0
        %517 = vmatpush.msra.mxu0 0.0
        %518 = vmatpush.msra.mxu0 0.0
        %v519 = vand.u32 %v209, 4294901760
        %v520 = vsub.f32 %v209, %v519
        %v521 = vand.u32 %v520, 4294901760
        %522 = vmatpush.msra.mxu0 %v521
        %v523 = vand.u32 %v208, 4294901760
        %v524 = vsub.f32 %v208, %v523
        %v525 = vand.u32 %v524, 4294901760
        %526 = vmatpush.msra.mxu0 %v525
        %v527 = vand.u32 %v212, 4294901760
        %528 = vmatmul.f32.gmra.mxu0 %v527
        %v529 = vpop.f32.mrf.mxu0
        %v530 = vadd.f32 %v461, %v529
        %v531 = vand.u32 %v215, 4294901760
        %532 = vmatmul.f32.gmra.mxu0 %v531
        %v533 = vpop.f32.mrf.mxu0
        %v534 = vadd.f32 %v467, %v533
        %v535 = vand.u32 %v218, 4294901760
        %536 = vmatmul.f32.gmra.mxu0 %v535
        %v537 = vpop.f32.mrf.mxu0
        %v538 = vadd.f32 %v473, %v537
        %v539 = vand.u32 %v221, 4294901760
        %540 = vmatmul.f32.gmra.mxu0 %v539
        %v541 = vpop.f32.mrf.mxu0
        %v542 = vadd.f32 %v479, %v541
        %v543 = vand.u32 %v224, 4294901760
        %544 = vmatmul.f32.gmra.mxu0 %v543
        %v545 = vpop.f32.mrf.mxu0
        %v546 = vadd.f32 %v485, %v545
        %v547 = vand.u32 %v227, 4294901760
        %548 = vmatmul.f32.gmra.mxu0 %v547
        %v549 = vpop.f32.mrf.mxu0
        %v550 = vadd.f32 %v491, %v549
        %v551 = vand.u32 %v230, 4294901760
        %552 = vmatmul.f32.gmra.mxu0 %v551
        %v553 = vpop.f32.mrf.mxu0
        %v554 = vadd.f32 %v497, %v553
        %v555 = vand.u32 %v233, 4294901760
        %556 = vmatmul.f32.gmra.mxu0 %v555
        %v557 = vpop.f32.mrf.mxu0
        %v558 = vadd.f32 %v503, %v557
        %559 = vdwg.mxu0
        %560 = vmatpush.msra.mxu0 0.0
        %561 = vmatpush.msra.mxu0 0.0
        %562 = vmatpush.msra.mxu0 0.0
        %563 = vmatpush.msra.mxu0 0.0
        %564 = vmatpush.msra.mxu0 0.0
        %565 = vmatpush.msra.mxu0 0.0
        %566 = vmatpush.msra.mxu0 0.0
        %567 = vmatpush.msra.mxu0 0.0
        %568 = vmatpush.msra.mxu0 0.0
        %569 = vmatpush.msra.mxu0 0.0
        %570 = vmatpush.msra.mxu0 0.0
        %571 = vmatpush.msra.mxu0 0.0
        %572 = vmatpush.msra.mxu0 0.0
        %573 = vmatpush.msra.mxu0 0.0
        %v574 = vand.u32 %v209, 4294901760
        %575 = vmatpush.msra.mxu0 %v574
        %v576 = vand.u32 %v208, 4294901760
        %577 = vmatpush.msra.mxu0 %v576
        %v578 = vand.u32 %v212, 4294901760
        %579 = vmatmul.f32.gmra.mxu0 %v578
        %v580 = vpop.f32.mrf.mxu0
        %v581 = vadd.f32 %v530, %v580
        %v582 = vand.u32 %v215, 4294901760
        %583 = vmatmul.f32.gmra.mxu0 %v582
        %v584 = vpop.f32.mrf.mxu0
        %v585 = vadd.f32 %v534, %v584
        %v586 = vand.u32 %v218, 4294901760
        %587 = vmatmul.f32.gmra.mxu0 %v586
        %v588 = vpop.f32.mrf.mxu0
        %v589 = vadd.f32 %v538, %v588
        %v590 = vand.u32 %v221, 4294901760
        %591 = vmatmul.f32.gmra.mxu0 %v590
        %v592 = vpop.f32.mrf.mxu0
        %v593 = vadd.f32 %v542, %v592
        %v594 = vand.u32 %v224, 4294901760
        %595 = vmatmul.f32.gmra.mxu0 %v594
        %v596 = vpop.f32.mrf.mxu0
        %v597 = vadd.f32 %v546, %v596
        %v598 = vand.u32 %v227, 4294901760
        %599 = vmatmul.f32.gmra.mxu0 %v598
        %v600 = vpop.f32.mrf.mxu0
        %v601 = vadd.f32 %v550, %v600
        %v602 = vand.u32 %v230, 4294901760
        %603 = vmatmul.f32.gmra.mxu0 %v602
        %v604 = vpop.f32.mrf.mxu0
        %v605 = vadd.f32 %v554, %v604
        %v606 = vand.u32 %v233, 4294901760
        %607 = vmatmul.f32.gmra.mxu0 %v606
        %v608 = vpop.f32.mrf.mxu0
        %v609 = vadd.f32 %v558, %v608
        %610 = vdwg.mxu0
        %vm611 = vcmask 64512
        %612 = vst.msk [vmem:[#allocation2] sm:$0xff] %vm611, %v581
        %613 = vst.msk [vmem:[#allocation2 + $0x8] sm:$0xff] %vm611, %v585
        %614 = vst.msk [vmem:[#allocation2 + $0x10] sm:$0xff] %vm611, %v589
        %615 = vst.msk [vmem:[#allocation2 + $0x18] sm:$0xff] %vm611, %v593
        %616 = vst.msk [vmem:[#allocation2 + $0x20] sm:$0xff] %vm611, %v597
        %617 = vst.msk [vmem:[#allocation2 + $0x28] sm:$0xff] %vm611, %v601
        %618 = vst.msk [vmem:[#allocation2 + $0x30] sm:$0xff] %vm611, %v605
        %619 = vst.msk [vmem:[#allocation2 + $0x38] sm:$0xff] %vm611, %v609
        %v620 = vld [vmem:[%s0] sm:$0xff]
        loop: start=0, step=1, limit=4
        $region33: #{tpu_custom_call.1} parent=31 // loop_pre_header
          _
        $region34: #{tpu_custom_call.1} parent=31 // loop_header
          %s622 = sphi 0, %s626
          %p623 = scmp.ge.s32.totalorder %s622, 4
        $region35: #{tpu_custom_call.1} parent=31 // loop_header_branch
          %625 = sbr.rel (%p623) target = $region39
        $region36: #{tpu_custom_call.1} parent=31 // loop_body
          %s627 = smul.u32 %s622, 16
          %s628 = scalar_lea.vmem [#allocation2], %s627
          %v629 = vld [vmem:[%s628] sm:$0xff]
          %v630 = vld [vmem:[%s628 + $0x8] sm:$0xff]
          %v632 = vsel %vm210, %v620, 0
          %634 = vmatpush.msra.mxu0 0.0
          %635 = vmatpush.msra.mxu0 0.0
          %636 = vmatpush.msra.mxu0 0.0
          %637 = vmatpush.msra.mxu0 0.0
          %638 = vmatpush.msra.mxu0 0.0
          %639 = vmatpush.msra.mxu0 0.0
          %640 = vmatpush.msra.mxu0 0.0
          %641 = vmatpush.msra.mxu0 0.0
          %642 = vmatpush.msra.mxu0 0.0
          %643 = vmatpush.msra.mxu0 0.0
          %644 = vmatpush.msra.mxu0 0.0
          %645 = vmatpush.msra.mxu0 0.0
          %646 = vmatpush.msra.mxu0 0.0
          %647 = vmatpush.msra.mxu0 0.0
          %v648 = vand.u32 %v630, 4294901760
          %649 = vmatpush.msra.mxu0 %v648
          %v650 = vand.u32 %v629, 4294901760
          %651 = vmatpush.msra.mxu0 %v650
          %v652 = vand.u32 %v632, 4294901760
          %v653 = vsub.f32 %v632, %v652
          %v654 = vand.u32 %v653, 4294901760
          %v655 = vsub.f32 %v653, %v654
          %v656 = vand.u32 %v655, 4294901760
          %657 = vmatmul.f32.gmra.mxu0 %v656
          %v658 = vpop.f32.mrf.mxu0
          %v659 = vadd.f32 0.0, %v658
          %660 = vdwg.mxu0
          %661 = vmatpush.msra.mxu0 0.0
          %662 = vmatpush.msra.mxu0 0.0
          %663 = vmatpush.msra.mxu0 0.0
          %664 = vmatpush.msra.mxu0 0.0
          %665 = vmatpush.msra.mxu0 0.0
          %666 = vmatpush.msra.mxu0 0.0
          %667 = vmatpush.msra.mxu0 0.0
          %668 = vmatpush.msra.mxu0 0.0
          %669 = vmatpush.msra.mxu0 0.0
          %670 = vmatpush.msra.mxu0 0.0
          %671 = vmatpush.msra.mxu0 0.0
          %672 = vmatpush.msra.mxu0 0.0
          %673 = vmatpush.msra.mxu0 0.0
          %674 = vmatpush.msra.mxu0 0.0
          %v675 = vand.u32 %v630, 4294901760
          %v676 = vsub.f32 %v630, %v675
          %v677 = vand.u32 %v676, 4294901760
          %v678 = vsub.f32 %v676, %v677
          %v679 = vand.u32 %v678, 4294901760
          %680 = vmatpush.msra.mxu0 %v679
          %v681 = vand.u32 %v629, 4294901760
          %v682 = vsub.f32 %v629, %v681
          %v683 = vand.u32 %v682, 4294901760
          %v684 = vsub.f32 %v682, %v683
          %v685 = vand.u32 %v684, 4294901760
          %686 = vmatpush.msra.mxu0 %v685
          %v687 = vand.u32 %v632, 4294901760
          %688 = vmatmul.f32.gmra.mxu0 %v687
          %v689 = vpop.f32.mrf.mxu0
          %v690 = vadd.f32 %v659, %v689
          %691 = vdwg.mxu0
          %692 = vmatpush.msra.mxu0 0.0
          %693 = vmatpush.msra.mxu0 0.0
          %694 = vmatpush.msra.mxu0 0.0
          %695 = vmatpush.msra.mxu0 0.0
          %696 = vmatpush.msra.mxu0 0.0
          %697 = vmatpush.msra.mxu0 0.0
          %698 = vmatpush.msra.mxu0 0.0
          %699 = vmatpush.msra.mxu0 0.0
          %700 = vmatpush.msra.mxu0 0.0
          %701 = vmatpush.msra.mxu0 0.0
          %702 = vmatpush.msra.mxu0 0.0
          %703 = vmatpush.msra.mxu0 0.0
          %704 = vmatpush.msra.mxu0 0.0
          %705 = vmatpush.msra.mxu0 0.0
          %v706 = vand.u32 %v630, 4294901760
          %v707 = vsub.f32 %v630, %v706
          %708 = vmatpush.msra.mxu0 %v707
          %v709 = vand.u32 %v629, 4294901760
          %v710 = vsub.f32 %v629, %v709
          %711 = vmatpush.msra.mxu0 %v710
          %v712 = vand.u32 %v632, 4294901760
          %v713 = vsub.f32 %v632, %v712
          %714 = vmatmul.f32.gmra.mxu0 %v713
          %v715 = vpop.f32.mrf.mxu0
          %v716 = vadd.f32 %v690, %v715
          %717 = vdwg.mxu0
          %718 = vmatpush.msra.mxu0 0.0
          %719 = vmatpush.msra.mxu0 0.0
          %720 = vmatpush.msra.mxu0 0.0
          %721 = vmatpush.msra.mxu0 0.0
          %722 = vmatpush.msra.mxu0 0.0
          %723 = vmatpush.msra.mxu0 0.0
          %724 = vmatpush.msra.mxu0 0.0
          %725 = vmatpush.msra.mxu0 0.0
          %726 = vmatpush.msra.mxu0 0.0
          %727 = vmatpush.msra.mxu0 0.0
          %728 = vmatpush.msra.mxu0 0.0
          %729 = vmatpush.msra.mxu0 0.0
          %730 = vmatpush.msra.mxu0 0.0
          %731 = vmatpush.msra.mxu0 0.0
          %v732 = vand.u32 %v630, 4294901760
          %733 = vmatpush.msra.mxu0 %v732
          %v734 = vand.u32 %v629, 4294901760
          %735 = vmatpush.msra.mxu0 %v734
          %v736 = vand.u32 %v632, 4294901760
          %v737 = vsub.f32 %v632, %v736
          %v738 = vand.u32 %v737, 4294901760
          %739 = vmatmul.f32.gmra.mxu0 %v738
          %v740 = vpop.f32.mrf.mxu0
          %v741 = vadd.f32 %v716, %v740
          %742 = vdwg.mxu0
          %743 = vmatpush.msra.mxu0 0.0
          %744 = vmatpush.msra.mxu0 0.0
          %745 = vmatpush.msra.mxu0 0.0
          %746 = vmatpush.msra.mxu0 0.0
          %747 = vmatpush.msra.mxu0 0.0
          %748 = vmatpush.msra.mxu0 0.0
          %749 = vmatpush.msra.mxu0 0.0
          %750 = vmatpush.msra.mxu0 0.0
          %751 = vmatpush.msra.mxu0 0.0
          %752 = vmatpush.msra.mxu0 0.0
          %753 = vmatpush.msra.mxu0 0.0
          %754 = vmatpush.msra.mxu0 0.0
          %755 = vmatpush.msra.mxu0 0.0
          %756 = vmatpush.msra.mxu0 0.0
          %v757 = vand.u32 %v630, 4294901760
          %v758 = vsub.f32 %v630, %v757
          %v759 = vand.u32 %v758, 4294901760
          %760 = vmatpush.msra.mxu0 %v759
          %v761 = vand.u32 %v629, 4294901760
          %v762 = vsub.f32 %v629, %v761
          %v763 = vand.u32 %v762, 4294901760
          %764 = vmatpush.msra.mxu0 %v763
          %v765 = vand.u32 %v632, 4294901760
          %766 = vmatmul.f32.gmra.mxu0 %v765
          %v767 = vpop.f32.mrf.mxu0
          %v768 = vadd.f32 %v741, %v767
          %769 = vdwg.mxu0
          %770 = vmatpush.msra.mxu0 0.0
          %771 = vmatpush.msra.mxu0 0.0
          %772 = vmatpush.msra.mxu0 0.0
          %773 = vmatpush.msra.mxu0 0.0
          %774 = vmatpush.msra.mxu0 0.0
          %775 = vmatpush.msra.mxu0 0.0
          %776 = vmatpush.msra.mxu0 0.0
          %777 = vmatpush.msra.mxu0 0.0
          %778 = vmatpush.msra.mxu0 0.0
          %779 = vmatpush.msra.mxu0 0.0
          %780 = vmatpush.msra.mxu0 0.0
          %781 = vmatpush.msra.mxu0 0.0
          %782 = vmatpush.msra.mxu0 0.0
          %783 = vmatpush.msra.mxu0 0.0
          %v784 = vand.u32 %v630, 4294901760
          %785 = vmatpush.msra.mxu0 %v784
          %v786 = vand.u32 %v629, 4294901760
          %787 = vmatpush.msra.mxu0 %v786
          %v788 = vand.u32 %v632, 4294901760
          %789 = vmatmul.f32.gmra.mxu0 %v788
          %v790 = vpop.f32.mrf.mxu0
          %v791 = vadd.f32 %v768, %v790
          %792 = vdwg.mxu0
          %s793 = smul.u32 %s622, 8
          %s794 = scalar_lea.vmem %s188, %s793 [#allocation3]
          %795 = vst.msk [vmem:[%s794] sm:$0xff] %vm611, %v791
        $region37: #{tpu_custom_call.1} parent=31 // loop_footer
          %s626 = sadd.s32 1, %s622
        $region38: #{tpu_custom_call.1} parent=31 // loop_footer_branch
          %621 = sbr.rel target = $region34
        $region39: #{tpu_custom_call.1} parent=31 // loop_exit
          _
        %s796 = sand.u32 %s109, 1
        %s797 = scalar_lea.sflag [#allocation4], %s796
        %s798 = sand.u32 %s109, 1
        %s799 = smul.addr %s798, 32
        %s800 = scalar_lea.vmem [#allocation3], %s799
        // Predicated region
        $region40: #{tpu_custom_call.1} parent=31 // pred_check
          %p801 = pneg %p119
        $region41: #{tpu_custom_call.1} parent=31 // pred_check_branch
          %803 = sbr.rel (%p801) target = $region43
        $region42: #{tpu_custom_call.1} parent=31 // pred_region
          %s804 = smul.u32 4, %s22
          %806 = vsyncadd %s797, 0
          %s807 = smul.addr %s21, 4
          %s808 = sadd.s32 %s804, %s807
          %s809 = smul.addr %s808, 8
          %s810 = scalar_lea.hbm %s3, %s809
          %s811 = sshll.u32 %s800, 4
          %s812 = int_to_ptr.vmem [resolvable:$true] %s811
          %s813 = sshll.u32 %s810, 4
          %s814 = int_to_ptr.hbm [resolvable:$true] %s813
          %819 = dma.vmem_to_hbm [thread:$0]  %s812, 512, %s814, %s797, 128, 128, 8
        $region43: #{tpu_custom_call.1} parent=31 // pred_fallthru
          _
      $region32: #{tpu_custom_call.1} parent=5 // pred_fallthru
        _
      %p820 = scmp.le.s32.totalorder 2, %s12
      // Predicated region
      $region44: #{tpu_custom_call.1} parent=5 // pred_check
        %p821 = pneg %p820
      $region45: #{tpu_custom_call.1} parent=5 // pred_check_branch
        %823 = sbr.rel (%p821) target = $region47
      $region46: #{tpu_custom_call.1} parent=5 // pred_region
        %s824 = ssub.s32 %s12, 2
        // Predicated region
        $region48: #{tpu_custom_call.1} parent=46 // pred_check
          %p825 = pneg %p125
        $region49: #{tpu_custom_call.1} parent=46 // pred_check_branch
          %827 = sbr.rel (%p825) target = $region51
        $region50: #{tpu_custom_call.1} parent=46 // pred_region
          %s828 = sand.u32 %s110, 1
          %s829 = scalar_lea.sflag [#allocation4], %s828
          %s830 = sand.u32 %s110, 1
          %s831 = smul.addr %s830, 32
          %s832 = scalar_lea.vmem [#allocation3], %s831
          %834 = dma.done %s829, 512
        $region51: #{tpu_custom_call.1} parent=46 // pred_fallthru
          _
      $region47: #{tpu_custom_call.1} parent=5 // pred_fallthru
        _
    $region6: #{tpu_custom_call.1} parent=1 // loop_footer
      %s16 = sadd.s32 1, %s12
    $region7: #{tpu_custom_call.1} parent=1 // loop_footer_branch
      %11 = sbr.rel target = $region3
    $region8: #{tpu_custom_call.1} parent=1 // loop_exit
      _
    %835 = vsyncpa [#allocation4], 1
    %s836 = scalar_lea.sflag [#allocation4], 1
    %837 = vsyncpa %s836, 1

</llo_original>
